<compile_context>
chip_gen: v5e
topology: v5e:2x2
jax: 0.10.0
libtpu: 0.0.40
codegen_flags: <defaults>
</compile_context>

<pallas_src>
import functools

import jax
import jax.numpy as jnp
from jax.experimental import pallas as pl
from jax.experimental.pallas import tpu as pltpu

LANE = 128
TARGET_BLOCK_BYTES = 4 * 1024 * 1024    # per-tile; in+out double-buffered ~= 16 MiB
VMEM_LIMIT_BYTES = 32 * 1024 * 1024     # raise v5e's 16 MiB default; no-op on v6e/v7x


def _cdiv(a, b):
    return -(-a // b)


def _round_up(a, b):
    return _cdiv(a, b) * b


def _quantize_kernel(interval_ref, x_ref, o_ref, *, max_val, exact_divide):
    # interval.data.clamp_(1e-5, inf)
    interval = jnp.maximum(interval_ref[0, 0], jnp.float32(1e-5))
    # Math in f32 regardless of I/O dtype (v5e has no bf16 VALU; the in-register
    # converts are free under the HBM bound).
    x = x_ref[...].astype(jnp.float32)
    if exact_divide:
        scaled = x / interval                       # bit-exact vs torch
    else:
        # Once-per-block scalar reciprocal; the vector chain only sees a multiply
        # (removes the EUP+Newton divide sequence from the per-element VALU work;
        #  <= 1 ulp deviation from a true divide).
        inv = jnp.float32(1.0) / interval
        scaled = x * inv
    x_clamped = jnp.clip(scaled, 0.0, max_val)
    # jnp.round == round-half-to-even == torch.round
    o_ref[...] = (jnp.round(x_clamped) * interval).astype(o_ref.dtype)


def quantize_activations(x, interval, bit_width, *, exact_divide=False):
    """Pallas port of QuantizeActivations.forward.

    x        : any-shape float array (e.g. NCHW activations), f32 or bf16
    interval : scalar float32 parameter (the learned step size)
    """
    orig_shape = x.shape
    orig_dtype = x.dtype

    # Keep f32 / bf16 HBM I/O as-is (bf16 halves traffic); other dtypes go
    # through f32.
    if orig_dtype in (jnp.dtype(jnp.float32), jnp.dtype(jnp.bfloat16)):
        io_dtype = jnp.dtype(orig_dtype)
    else:
        # TODO(synk): torch computes in the input dtype; other dtypes (e.g. f16)
        # are routed through f32 here, so only f32 is bit-identical to torch.
        io_dtype = jnp.dtype(jnp.float32)
        x = x.astype(jnp.float32)

    itemsize = io_dtype.itemsize
    sub_gran = 8 * (4 // itemsize)          # (8,128) f32 tiles, (16,128) bf16 tiles

    n = x.size
    xf = jnp.ravel(x)
    pad = (-n) % LANE                        # pad only to a lane (128) multiple
    if pad:
        xf = jnp.pad(xf, (0, pad))
    x2 = xf.reshape(-1, LANE)
    rows = x2.shape[0]

    # ~4 MiB tiles sized in bytes -> 8192 f32 rows / 16384 bf16 rows per block.
    max_block_rows = max(sub_gran, TARGET_BLOCK_BYTES // (LANE * itemsize))
    if rows <= max_block_rows:
        block_rows = rows                    # single block; full-extent dims are legal
    else:
        block_rows = max_block_rows
        g = _cdiv(rows, block_rows)
        if g % 2 == 1:                       # even block count keeps v7x's 2 TCs balanced
            cand = _round_up(_cdiv(rows, g + 1), sub_gran)
            if cand >= sub_gran and _cdiv(rows, cand) % 2 == 0:
                block_rows = cand
    grid = (_cdiv(rows, block_rows),)

    interval_arr = jnp.reshape(jnp.asarray(interval, dtype=jnp.float32), (1, 1))
    max_val = float(2 ** bit_width - 1)

    cost = pl.CostEstimate(
        flops=4 * n,
        transcendentals=0,
        bytes_accessed=2 * itemsize * n,
    )

    out2 = pl.pallas_call(
        functools.partial(_quantize_kernel, max_val=max_val, exact_divide=exact_divide),
        out_shape=jax.ShapeDtypeStruct((rows, LANE), io_dtype),
        grid_spec=pltpu.PrefetchScalarGridSpec(
            num_scalar_prefetch=0,
            grid=grid,
            in_specs=[
                pl.BlockSpec(memory_space=pltpu.MemorySpace.SMEM),   # interval scalar
                pl.BlockSpec((block_rows, LANE), lambda i: (i, 0)),  # activation tile
            ],
            out_specs=pl.BlockSpec((block_rows, LANE), lambda i: (i, 0)),
        ),
        compiler_params=pltpu.CompilerParams(
            dimension_semantics=("parallel",),
            vmem_limit_bytes=VMEM_LIMIT_BYTES,
        ),
        cost_estimate=cost,
    )(interval_arr, x2)

    outf = out2.ravel()
    if pad:
        outf = outf[:n]
    out = outf.reshape(orig_shape)
    if out.dtype != orig_dtype:
        out = out.astype(orig_dtype)
    return out


def quantize_activations_ref(x, interval, bit_width):
    """Pure-JAX reference mirroring the PyTorch forward (math in f32)."""
    iv = jnp.maximum(jnp.asarray(interval, jnp.float32), jnp.float32(1e-5))
    max_val = float(2 ** bit_width - 1)
    x_clamped = jnp.clip(x.astype(jnp.float32) / iv, 0.0, max_val)
    return jnp.round(x_clamped) * iv


def _check(out, x, interval, bit_width, *, rtol, atol, boundary_window=1e-4):
    """Boundary-aware comparison against the reference.

    Exact (to rtol/atol) everywhere except for elements whose scaled value sits
    within float-rounding distance of a .5 rounding boundary, where a single
    quantization-step difference is tolerated (divide vs reciprocal-multiply,
    or Mosaic-vs-XLA divide, can differ by ~1 ulp there).
    """
    iv = jnp.maximum(jnp.asarray(interval, jnp.float32), jnp.float32(1e-5))
    max_val = float(2 ** bit_width - 1)
    ref = quantize_activations_ref(x, interval, bit_width)
    q = jnp.clip(x.astype(jnp.float32) / iv, 0.0, max_val)
    err = jnp.abs(out.astype(jnp.float32) - ref)
    tol = atol + rtol * jnp.abs(ref)
    near_half = jnp.abs((q - jnp.floor(q)) - 0.5) <= boundary_window
    ok = (err <= tol) | (near_half & (err <= iv + tol))
    return bool(jnp.all(ok))


if __name__ == "__main__":
    key = jax.random.PRNGKey(0)
    kx, ky, kz = jax.random.split(key, 3)
    bit_width = 4
    levels = 2 ** bit_width - 1

    # --- f32 NCHW activations (lane-aligned: no pad / no tail slice) --------
    x = jax.random.normal(kx, (2, 4, 16, 16), dtype=jnp.float32) * 3.0
    # Deterministic parameter init mimicking initialize_interval(): max(x)/(2^b-1)
    interval = jnp.max(x) / levels
    out = jax.block_until_ready(quantize_activations(x, interval, bit_width))
    assert out.shape == x.shape and out.dtype == x.dtype
    assert _check(out, x, interval, bit_width, rtol=1e-6, atol=1e-6), "f32 mismatch vs reference"

    # --- bf16 activations (bf16 HBM I/O, f32 math inside the kernel) --------
    xb = (jax.random.normal(ky, (2, 4, 16, 16), dtype=jnp.float32) * 3.0).astype(jnp.bfloat16)
    interval_b = jnp.max(xb.astype(jnp.float32)) / levels
    out_b = jax.block_until_ready(quantize_activations(xb, interval_b, bit_width))
    assert out_b.shape == xb.shape and out_b.dtype == xb.dtype
    assert _check(out_b, xb, interval_b, bit_width, rtol=2.0 ** -7, atol=1e-3), \
        "bf16 mismatch vs reference"

    # --- ragged f32 shape (exercises the minimal 128-lane pad path) ---------
    xr = jax.random.normal(kz, (3, 5, 7, 11), dtype=jnp.float32) * 2.0
    interval_r = jnp.max(xr) / levels
    out_r = jax.block_until_ready(quantize_activations(xr, interval_r, bit_width))
    assert out_r.shape == xr.shape and out_r.dtype == xr.dtype
    assert _check(out_r, xr, interval_r, bit_width, rtol=1e-6, atol=1e-6), \
        "ragged mismatch vs reference"

    # --- exact-divide mode (bit-exact torch formula inside the kernel) ------
    out_e = jax.block_until_ready(
        quantize_activations(x, interval, bit_width, exact_divide=True))
    assert _check(out_e, x, interval, bit_width, rtol=1e-6, atol=1e-6), \
        "exact-divide mismatch vs reference"

    print("KERNEL_OK")
</pallas_src>

<mosaic_0001>
module attributes {stable_mosaic.version = 11 : i64} {
  func.func @_quantize_kernel(%arg0: i32, %arg1: memref<1x1xf32, #tpu.memory_space<smem>>, %arg2: memref<16x128xf32, #tpu.memory_space<vmem>>, %arg3: memref<16x128xf32, #tpu.memory_space<vmem>>) attributes {dimension_semantics = [#tpu.dimension_semantics<parallel>], iteration_bounds = array<i64: 1>, scalar_prefetch = 0 : i64, scratch_operands = 0 : i64, tpu.core_type = #tpu.core_type<tc>, window_params = [{transform_indices = @transform_0, window_bounds = array<i64: 1, 1>}, {transform_indices = @transform_1, window_bounds = array<i64: 16, 128>}, {transform_indices = @transform_2, window_bounds = array<i64: 16, 128>}]} {
    %c0 = arith.constant 0 : index
    %c0_0 = arith.constant 0 : index
    %0 = memref.load %arg1[%c0, %c0_0] : memref<1x1xf32, #tpu.memory_space<smem>>
    %cst = arith.constant 9.99999974E-6 : f32
    %1 = arith.maximumf %0, %cst : f32
    %c0_1 = arith.constant 0 : index
    %c0_2 = arith.constant 0 : index
    %2 = vector.load %arg2[%c0_1, %c0_2] : memref<16x128xf32, #tpu.memory_space<vmem>>, vector<16x128xf32>
    %cst_3 = arith.constant 1.000000e+00 : f32
    %3 = arith.divf %cst_3, %1 : f32
    %4 = vector.broadcast %3 : f32 to vector<16x128xf32>
    %5 = arith.mulf %2, %4 : vector<16x128xf32>
    %cst_4 = arith.constant 0.000000e+00 : f32
    %cst_5 = arith.constant 1.500000e+01 : f32
    %6 = vector.broadcast %cst_4 : f32 to vector<16x128xf32>
    %7 = arith.maximumf %6, %5 : vector<16x128xf32>
    %8 = vector.broadcast %cst_5 : f32 to vector<16x128xf32>
    %9 = arith.minimumf %8, %7 : vector<16x128xf32>
    %10 = math.roundeven %9 : vector<16x128xf32>
    %11 = vector.broadcast %1 : f32 to vector<16x128xf32>
    %12 = arith.mulf %10, %11 : vector<16x128xf32>
    %c0_6 = arith.constant 0 : index
    %c0_7 = arith.constant 0 : index
    %13 = vector.load %arg3[%c0_6, %c0_7] : memref<16x128xf32, #tpu.memory_space<vmem>>, vector<16x128xf32>
    tpu.vector_store %arg3[%c0_6, %c0_7], %12 {strides = array<i32>} : memref<16x128xf32, #tpu.memory_space<vmem>>, vector<16x128xf32>,
    return
  }
  func.func @transform_0(%arg0: i32) -> (i32, i32) {
    %c0_i32 = arith.constant 0 : i32
    %c0_i32_0 = arith.constant 0 : i32
    %c0_i32_1 = arith.constant 0 : i32
    return %c0_i32, %c0_i32_0 : i32, i32
  }
  func.func @transform_1(%arg0: i32) -> (i32, i32) {
    %c0_i32 = arith.constant 0 : i32
    %c0_i32_0 = arith.constant 0 : i32
    return %arg0, %c0_i32 : i32, i32
  }
  func.func @transform_2(%arg0: i32) -> (i32, i32) {
    %c0_i32 = arith.constant 0 : i32
    %c0_i32_0 = arith.constant 0 : i32
    return %arg0, %c0_i32 : i32, i32
  }
}

</mosaic_0001>

<llo_original>
// kernel: tpu_custom_call.1
$region0: #{tpu_custom_call.1}
  #allocation0 [shape = 'u32[]', space=smem, size = 0x4, offset = 0x4, fixed_abs, tag = 'smem constant byte address 0x4 - core index']
  #allocation1 [shape = 'u32[72,128]{1,0:T(1,128)}', space=vmem, size = 0x9000, scoped, tag = 'internal scratch']
  #allocation2 [shape = 'f32[1,1]{1,0:T(1,128)S(6)}', space=smem, size = 0x200, scoped, tag = 'scoped memory for tpu_custom_call.1']
  %s0 = inlined_call_operand.<no memory space> [shape: f32[1,1], index: 0, kind: input, shape index: {}]
  %s1 = inlined_call_operand.hbm [shape: f32[16,128], index: 1, kind: input, shape index: {}]
  %s2 = inlined_call_operand.hbm [shape: f32[16,128], index: 2, kind: output, shape index: {}]
  %s3 = sld [smem:[#allocation0]]
  $region22: #{tpu_custom_call.1} parent=0
    _
  %s5 = ssub.s32 1, %s3
  %s6 = scalar_select 0, %s5, %s3
  %7 = sst [smem:[#allocation2]] %s0
  $region1: #{tpu_custom_call.1} parent=0
    #allocation3 [shape = 'u8[8192]{0}', space=vmem, size = 0x2000, scoped, tag = 'input window, operand 1, single buffered']
    #allocation4 [shape = 's32[1]{0}', space=sflag, size = 0x4, scoped, tag = 'scoped memory for tpu_custom_call.1']
    #allocation5 [shape = 's32[1]{0}', space=sflag, size = 0x4, scoped, tag = 'scoped memory for tpu_custom_call.1']
    #allocation6 [shape = 'u8[8192]{0}', space=vmem, size = 0x2000, scoped, tag = 'output window, operand 0, single buffered']
    %8 = vsyncpa [#allocation4], 0
    %9 = vsyncpa [#allocation5], 0
    // Predicated region
    $region2: #{tpu_custom_call.1} parent=1 // pred_check
      _
    $region3: #{tpu_custom_call.1} parent=1 // pred_check_branch
      %11 = sbr.rel (0) target = $region5
    $region4: #{tpu_custom_call.1} parent=1 // pred_region
      _
    $region5: #{tpu_custom_call.1} parent=1 // pred_fallthru
      _
    // Predicated region
    $region6: #{tpu_custom_call.1} parent=1 // pred_check
      _
    $region7: #{tpu_custom_call.1} parent=1 // pred_check_branch
      %13 = sbr.rel (0) target = $region9
    $region8: #{tpu_custom_call.1} parent=1 // pred_region
      %15 = vsyncadd [#allocation4], 0
      %s16 = sshll.u32 %s1, 4
      %s17 = int_to_ptr.hbm [resolvable:$true] %s16
      %s18 = sshll.u32 [#allocation3], 4
      %s19 = int_to_ptr.vmem [resolvable:$true] %s18
      %24 = dma.hbm_to_vmem [thread:$0]  %s17, 256, %s19, [#allocation4], 128, 128, 8
    $region9: #{tpu_custom_call.1} parent=1 // pred_fallthru
      _
    // Predicated region
    $region10: #{tpu_custom_call.1} parent=1 // pred_check
      _
    $region11: #{tpu_custom_call.1} parent=1 // pred_check_branch
      %26 = sbr.rel (0) target = $region13
    $region12: #{tpu_custom_call.1} parent=1 // pred_region
      %28 = dma.done [#allocation4], 256
    $region13: #{tpu_custom_call.1} parent=1 // pred_fallthru
      _
    %s29 = sld [smem:[#allocation2]]
    %s30 = smax.f32 %s29, 1e-05
    %v31 = vld [vmem:[#allocation3] sm:$0xff]
    %v32 = vld [vmem:[#allocation3 + $0x8] sm:$0xff]
    %v33 = vstv %s30
    %v34 = vrcp.pop %v33
    %v35 = vmul.f32 %v33, %v34
    %v36 = vsub.f32 1.0, %v35
    %v37 = vmul.f32 %v34, %v36
    %v38 = vadd.f32 %v34, %v37
    %vm39 = vweird.f32 %v33
    %vm40 = vweird.f32 %v34
    %vm41 = vmor %vm39, %vm40
    %v42 = vsel %vm41, %v34, %v38
    %v43 = vand.u32 2147483647, %v33
    %vm44 = vcmp.eq.f32.partialorder %v43, 8.507059e+37
    %v45 = vand.u32 %v33, 2147483648
    %v46 = vor.u32 1.1754944e-38, %v45
    %v47 = vsel %vm44, %v46, %v42
    %s48 = vtos %v47
    %v49 = vstv %s48
    %v50 = vmul.f32 %v31, %v49
    %v51 = vmul.f32 %v32, %v49
    %v52 = vmax.f32 %v50, 0.0
    %v53 = vmax.f32 %v51, 0.0
    %v54 = vmin.f32 %v52, 15.0
    %v55 = vmin.f32 %v53, 15.0
    %v56 = vround.ne.pseudo %v54
    %v57 = vround.ne.pseudo %v55
    %v58 = vstv %s30
    %v59 = vmul.f32 %v56, %v58
    %v60 = vmul.f32 %v57, %v58
    %61 = vst [vmem:[#allocation6] sm:$0xff] %v59
    %62 = vst [vmem:[#allocation6 + $0x8] sm:$0xff] %v60
    // Predicated region
    $region14: #{tpu_custom_call.1} parent=1 // pred_check
      _
    $region15: #{tpu_custom_call.1} parent=1 // pred_check_branch
      %64 = sbr.rel (0) target = $region17
    $region16: #{tpu_custom_call.1} parent=1 // pred_region
      %66 = vsyncadd [#allocation5], 0
      %s67 = sshll.u32 [#allocation6], 4
      %s68 = int_to_ptr.vmem [resolvable:$true] %s67
      %s69 = sshll.u32 %s2, 4
      %s70 = int_to_ptr.hbm [resolvable:$true] %s69
      %75 = dma.vmem_to_hbm [thread:$0]  %s68, 256, %s70, [#allocation5], 128, 128, 8
    $region17: #{tpu_custom_call.1} parent=1 // pred_fallthru
      _
    // Predicated region
    $region18: #{tpu_custom_call.1} parent=1 // pred_check
      _
    $region19: #{tpu_custom_call.1} parent=1 // pred_check_branch
      %77 = sbr.rel (0) target = $region21
    $region20: #{tpu_custom_call.1} parent=1 // pred_region
      %79 = dma.done [#allocation5], 256
    $region21: #{tpu_custom_call.1} parent=1 // pred_fallthru
      _
    %80 = vsyncpa [#allocation4], 1
    %81 = vsyncpa [#allocation5], 1

</llo_original>
